<compile_context>
chip_gen: v7x
topology: tpu7x:2x2x1
jax: 0.10.0
libtpu: 0.0.40
codegen_flags: <defaults>
</compile_context>

<pallas_src>
import numpy as np
import jax
import jax.numpy as jnp
from jax.experimental import pallas as pl
from jax.experimental.pallas import tpu as pltpu


_MAX_TILE_BYTES = 8 * 1024 * 1024     # per-block bytes: 2 in-bufs + 2 out-bufs = 32 MiB
_VMEM_LIMIT_BYTES = 48 * 1024 * 1024  # explicit scoped-VMEM budget (v5e/v6e/v7x safe)
_LANE = 128


def _zero_embedding_kernel(x_ref, o_ref):
    # One VPU multiply per element: keeps torch's NaN/inf -> NaN (and -0.0) behavior.
    o_ref[...] = x_ref[...] * jnp.zeros((), dtype=x_ref.dtype)


def _sublane_multiple(dtype) -> int:
    """Packed-sublane row multiple: 8 for 32-bit, 16 for 16-bit, 32 for 8-bit dtypes."""
    itemsize = int(np.dtype(dtype).itemsize)
    if itemsize >= 4:
        return 8
    if itemsize == 2:
        return 16
    return 32


def _choose_cols(n: int):
    """Largest lane-dense column width (multiple of 128) dividing n; else pad n."""
    for cols in (8192, 4096, 2048, 1024, 512, 256, 128):
        if n % cols == 0:
            return cols, n
    # Non-128-divisible element count: pad the flat array up to a lane multiple
    # so stores stay unmasked (the padded tail is sliced off in the wrapper).
    n_pad = ((n + _LANE - 1) // _LANE) * _LANE
    return _LANE, n_pad


def _pick_row_block(rows: int, cols: int, itemsize: int, sub_mult: int) -> int:
    """Row tile sized by bytes (<= ~8 MiB), aligned to the dtype's packed sublane."""
    bytes_per_row = cols * itemsize
    rb_cap = max(1, _MAX_TILE_BYTES // bytes_per_row)

    if rows <= rb_cap:
        # Whole array fits in one tile.  Split into >= 2 tiles when alignment
        # allows so v7x's two TensorCores both get work on the "parallel" axis.
        half = rows // 2
        if half >= sub_mult:
            return (half // sub_mult) * sub_mult
        return rows  # tiny input: single full-extent block (always legal)

    rb = (rb_cap // sub_mult) * sub_mult
    return max(sub_mult, rb)


def zero_embedding(x: jax.Array) -> jax.Array:
    """JAX/Pallas equivalent of ZeroEmbedding.forward: x.unsqueeze(-1) * 0."""
    orig_shape = x.shape
    n = x.size

    # Degenerate empty input: no kernel needed.
    if n == 0:
        return jnp.zeros(orig_shape + (1,), dtype=x.dtype)

    itemsize = int(np.dtype(x.dtype).itemsize)
    sub_mult = _sublane_multiple(x.dtype)
    cols, n_pad = _choose_cols(n)

    flat = x.reshape(-1)
    if n_pad != n:
        flat = jnp.pad(flat, (0, n_pad - n))
    rows = n_pad // cols
    x2d = flat.reshape(rows, cols)

    rb = _pick_row_block(rows, cols, itemsize, sub_mult)
    grid = (pl.cdiv(rows, rb),)

    # Pure memory-traffic custom call: read N elems, write N elems.
    cost = pl.CostEstimate(
        flops=n,
        transcendentals=0,
        bytes_accessed=2 * n * itemsize,
    )

    out2d = pl.pallas_call(
        _zero_embedding_kernel,
        out_shape=jax.ShapeDtypeStruct((rows, cols), x.dtype),
        grid_spec=pl.GridSpec(
            grid=grid,
            in_specs=[pl.BlockSpec((rb, cols), lambda i: (i, 0))],
            out_specs=pl.BlockSpec((rb, cols), lambda i: (i, 0)),
        ),
        compiler_params=pltpu.CompilerParams(
            # Row tiles are independent -> shard across v7x's two TensorCores.
            dimension_semantics=("parallel",),
            vmem_limit_bytes=_VMEM_LIMIT_BYTES,
        ),
        cost_estimate=cost,
    )(x2d)

    out_flat = out2d.reshape(-1)
    if n_pad != n:
        out_flat = out_flat[:n]
    # unsqueeze(-1): pure reshape glue in the wrapper.
    return out_flat.reshape(orig_shape + (1,))


if __name__ == "__main__":
    key = jax.random.PRNGKey(0)
    # Small NCHW-like input consistent with typical usage: (batch=2, C=4, H=16, W=16)
    x = jax.random.normal(key, (2, 4, 16, 16), dtype=jnp.float32)

    out = jax.block_until_ready(zero_embedding(x))

    # Correctness checks against reference semantics.
    expected_shape = x.shape + (1,)
    assert out.shape == expected_shape, (out.shape, expected_shape)
    assert out.dtype == x.dtype
    assert bool(jnp.all(out == 0.0))

    # NaN propagation matches torch: nan * 0 -> nan.
    x_nan = x.at[0, 0, 0, 0].set(jnp.nan)
    out_nan = jax.block_until_ready(zero_embedding(x_nan))
    assert bool(jnp.isnan(out_nan[0, 0, 0, 0, 0]))
    assert bool(jnp.all(out_nan[0, 0, 0, 1:, 0] == 0.0))

    # Padding fallback path (element count not a multiple of 128).
    x_odd = jax.random.normal(key, (3, 5, 7), dtype=jnp.float32)
    out_odd = jax.block_until_ready(zero_embedding(x_odd))
    assert out_odd.shape == (3, 5, 7, 1)
    assert out_odd.dtype == x_odd.dtype
    assert bool(jnp.all(out_odd == 0.0))

    print("KERNEL_OK")
</pallas_src>

<mosaic_0001>
module attributes {stable_mosaic.version = 11 : i64} {
  func.func @_zero_embedding_kernel(%arg0: i32, %arg1: memref<1x2048xf32, #tpu.memory_space<vmem>>, %arg2: memref<1x2048xf32, #tpu.memory_space<vmem>>) attributes {dimension_semantics = [#tpu.dimension_semantics<parallel>], iteration_bounds = array<i64: 1>, scalar_prefetch = 0 : i64, scratch_operands = 0 : i64, tpu.core_type = #tpu.core_type<tc>, window_params = [{transform_indices = @transform_0, window_bounds = array<i64: 1, 2048>}, {transform_indices = @transform_1, window_bounds = array<i64: 1, 2048>}]} {
    %c0 = arith.constant 0 : index
    %c0_0 = arith.constant 0 : index
    %0 = vector.load %arg1[%c0, %c0_0] : memref<1x2048xf32, #tpu.memory_space<vmem>>, vector<1x2048xf32>
    %cst = arith.constant 0.000000e+00 : f32
    %1 = vector.broadcast %cst : f32 to vector<1x2048xf32>
    %2 = arith.mulf %0, %1 : vector<1x2048xf32>
    %c0_1 = arith.constant 0 : index
    %c0_2 = arith.constant 0 : index
    %3 = vector.load %arg2[%c0_1, %c0_2] : memref<1x2048xf32, #tpu.memory_space<vmem>>, vector<1x2048xf32>
    tpu.vector_store %arg2[%c0_1, %c0_2], %2 {strides = array<i32>} : memref<1x2048xf32, #tpu.memory_space<vmem>>, vector<1x2048xf32>,
    return
  }
  func.func @transform_0(%arg0: i32) -> (i32, i32) {
    %c0_i32 = arith.constant 0 : i32
    %c0_i32_0 = arith.constant 0 : i32
    return %arg0, %c0_i32 : i32, i32
  }
  func.func @transform_1(%arg0: i32) -> (i32, i32) {
    %c0_i32 = arith.constant 0 : i32
    %c0_i32_0 = arith.constant 0 : i32
    return %arg0, %c0_i32 : i32, i32
  }
}

</mosaic_0001>

<llo_original>
// kernel: tpu_custom_call.1
$region0: #{tpu_custom_call.1}
  #allocation0 [shape = 'u32[]', space=smem, size = 0x4, offset = 0x4, fixed_abs, tag = 'smem constant byte address 0x4 - core index']
  #allocation1 [shape = 'u32[144,128]{1,0:T(1,128)}', space=vmem, size = 0x12000, scoped, tag = 'internal scratch']
  %s0 = inlined_call_operand.hbm [shape: f32[1,2048], index: 0, kind: input, shape index: {}]
  %s1 = inlined_call_operand.hbm [shape: f32[1,2048], index: 1, kind: output, shape index: {}]
  %s2 = sld [smem:[#allocation0]]
  $region18: #{tpu_custom_call.1} parent=0
    _
  %s4 = ssub.s32 1, %s2
  %s5 = scalar_select 0, %s4, %s2
  $region1: #{tpu_custom_call.1} parent=0
    #allocation2 [shape = 'u8[8192]{0}', space=vmem, size = 0x2000, scoped, tag = 'input window, operand 0, single buffered']
    #allocation3 [shape = 's32[1]{0}', space=sflag, size = 0x4, scoped, tag = 'scoped memory for tpu_custom_call.1']
    #allocation4 [shape = 's32[1]{0}', space=sflag, size = 0x4, scoped, tag = 'scoped memory for tpu_custom_call.1']
    #allocation5 [shape = 'u8[8192]{0}', space=vmem, size = 0x2000, scoped, tag = 'output window, operand 0, single buffered']
    %6 = vsyncpa [#allocation3], 0
    %7 = vsyncpa [#allocation4], 0
    // Predicated region
    $region2: #{tpu_custom_call.1} parent=1 // pred_check
      _
    $region3: #{tpu_custom_call.1} parent=1 // pred_check_branch
      %9 = sbr.rel (0) target = $region5
    $region4: #{tpu_custom_call.1} parent=1 // pred_region
      %s11 = ssub.s32 256, 256
      %12 = vsyncadd [#allocation3], %s11
      %s14 = sshll.u32 [#allocation2], 4
      %s15 = int_to_ptr.vmem [resolvable:$true] %s14
      %17 = dma.hbm_to_vmem [thread:$0]  %s0, 256, %s15, [#allocation3]
    $region5: #{tpu_custom_call.1} parent=1 // pred_fallthru
      _
    // Predicated region
    $region6: #{tpu_custom_call.1} parent=1 // pred_check
      _
    $region7: #{tpu_custom_call.1} parent=1 // pred_check_branch
      %19 = sbr.rel (0) target = $region9
    $region8: #{tpu_custom_call.1} parent=1 // pred_region
      %20 = dma.done [#allocation3], 256
    $region9: #{tpu_custom_call.1} parent=1 // pred_fallthru
      _
    %v21 = vld [vmem:[#allocation2] sm:$0xff]
    %v22 = vld [vmem:[#allocation2 + $0x8] sm:$0xff]
    %v23 = vmul.f32 %v21, 0.0
    %v24 = vmul.f32 %v22, 0.0
    %25 = vst [vmem:[#allocation5] sm:$0xff] %v23
    %26 = vst [vmem:[#allocation5 + $0x8] sm:$0xff] %v24
    // Predicated region
    $region10: #{tpu_custom_call.1} parent=1 // pred_check
      _
    $region11: #{tpu_custom_call.1} parent=1 // pred_check_branch
      %28 = sbr.rel (0) target = $region13
    $region12: #{tpu_custom_call.1} parent=1 // pred_region
      %s30 = ssub.s32 256, 256
      %31 = vsyncadd [#allocation4], %s30
      %s33 = sshll.u32 [#allocation5], 4
      %s34 = int_to_ptr.vmem [resolvable:$true] %s33
      %36 = dma.vmem_to_hbm [thread:$0]  %s34, 256, %s1, [#allocation4]
    $region13: #{tpu_custom_call.1} parent=1 // pred_fallthru
      _
    // Predicated region
    $region14: #{tpu_custom_call.1} parent=1 // pred_check
      _
    $region15: #{tpu_custom_call.1} parent=1 // pred_check_branch
      %38 = sbr.rel (0) target = $region17
    $region16: #{tpu_custom_call.1} parent=1 // pred_region
      %39 = dma.done [#allocation4], 256
    $region17: #{tpu_custom_call.1} parent=1 // pred_fallthru
      _
    %40 = vsyncpa [#allocation3], 1
    %41 = vsyncpa [#allocation4], 1

</llo_original>
